<compile_context>
chip_gen: v6e
topology: v6e:2x2x1
jax: 0.10.0
libtpu: 0.0.40
codegen_flags: <defaults>
</compile_context>

<pallas_src>
import functools

import jax
import jax.numpy as jnp
from jax import lax
from jax.experimental import pallas as pl
from jax.experimental.pallas import tpu as pltpu


def _cdiv(a, b):
    return -(-a // b)


def _round_up(x, mult):
    return _cdiv(x, mult) * mult


def _choose_tile(n, tile_n, chunk, min_steps=2):
    # Aim for tiles of ~tile_n lanes, but (a) keep at least `min_steps` grid
    # steps so v7x can shard the batch across its two TensorCores, and
    # (b) derive the tile from the actual N so the last tile is never mostly
    # padding.  Tiles are multiples of `chunk` (itself a multiple of 128).
    steps = max(_cdiv(n, max(tile_n, chunk)), min_steps)
    return _round_up(_cdiv(n, steps), chunk)


def _clf_kernel(xt_ref, wt_ref, a_ref, out_ref, *, num_inputs, chunk,
                stage2_bf16):
    # xt_ref : (inputs, TILE_N)    batch on lanes
    # wt_ref : (m, inputs+1)       W transposed, VMEM-resident across the grid
    # a_ref  : (m, outputs)        VMEM-resident across the grid
    # out_ref: (outputs, TILE_N)   batch on lanes (lane-dense stores)
    wt = wt_ref[...]
    a = a_ref[...]
    outputs = a.shape[1]
    tile = out_ref.shape[-1]
    num_chunks = tile // chunk

    # Hoisted broadcast operands (tiny; live in vregs across the chunk loop).
    w_cols = [wt[:, i:i + 1] for i in range(num_inputs)]
    bias_col = wt[:, num_inputs:num_inputs + 1]
    a_dtype = jnp.bfloat16 if stage2_bf16 else jnp.float32
    a_cols = [a[:, o:o + 1].astype(a_dtype) for o in range(outputs)]

    def body(c, carry):
        start = pl.multiple_of(c * chunk, chunk)
        x = xt_ref[:, pl.ds(start, chunk)]                  # (inputs, chunk)

        # Stage 1: hidden_t (m, chunk) = relu(W^T x + bias); VPU broadcast FMA
        # with the folded ones-column as the bias row.
        h = w_cols[0] * x[0:1, :] + bias_col
        for i in range(1, num_inputs):
            h = h + w_cols[i] * x[i:i + 1, :]
        hidden = jnp.maximum(h, 0.0)                        # stays in vregs
        if stage2_bf16:
            hidden = hidden.astype(jnp.bfloat16)

        # Stage 2: per-class VPU multiply + XLU sublane reduce, each row
        # stored directly into the lane-dense output block (no concatenate).
        for o in range(outputs):
            row = jnp.sum(a_cols[o] * hidden, axis=0, keepdims=True,
                          dtype=jnp.float32)
            out_ref[o:o + 1, pl.ds(start, chunk)] = row.astype(out_ref.dtype)
        return carry

    lax.fori_loop(0, num_chunks, body, None, unroll=True)


def classification_forward(x, W, a, *, tile_n=8192, chunk=512,
                           stage2_bf16=False, transpose_output=True):
    """x: (N, inputs), W: (inputs+1, m), a: (m, outputs) -> (N, outputs).

    transpose_output=False returns the kernel-native lane-dense (outputs, N)
    layout, skipping the wrapper-side transpose's extra HBM pass (fuse the
    transpose into the consumer instead).
    """
    N, num_inputs = x.shape
    m = W.shape[1]
    outputs = a.shape[1]
    assert W.shape[0] == num_inputs + 1 and a.shape[0] == m

    # Lane-dense layout plumbing: batch on the last (lane) axis.
    x_t = x.T            # (inputs, N)   (a cheap reshape when inputs == 1)
    w_t = W.T            # (m, inputs+1)

    tile = _choose_tile(N, tile_n, chunk)
    n_pad = _round_up(N, tile)
    if n_pad != N:
        # Padded columns produce garbage outputs that are sliced off below.
        x_t = jnp.pad(x_t, ((0, 0), (0, n_pad - N)))

    out_t = pl.pallas_call(
        functools.partial(_clf_kernel, num_inputs=num_inputs, chunk=chunk,
                          stage2_bf16=stage2_bf16),
        out_shape=jax.ShapeDtypeStruct((outputs, n_pad), x.dtype),
        grid_spec=pltpu.PrefetchScalarGridSpec(
            num_scalar_prefetch=0,
            grid=(n_pad // tile,),
            in_specs=[
                pl.BlockSpec((num_inputs, tile), lambda i: (0, i)),
                pl.BlockSpec((m, num_inputs + 1), lambda i: (0, 0)),
                pl.BlockSpec((m, outputs), lambda i: (0, 0)),
            ],
            out_specs=pl.BlockSpec((outputs, tile), lambda i: (0, i)),
        ),
        compiler_params=pltpu.CompilerParams(
            dimension_semantics=("parallel",),
            vmem_limit_bytes=32 * 1024 * 1024),
    )(x_t, w_t, a)

    out_t = out_t[:, :N]
    return out_t.T if transpose_output else out_t


def init_params(key, m, num_inputs=1, outputs=10):
    """Replicates what nn.init.kaiming_normal_(tensor, nonlinearity='relu')
    literally does on these raw 2-D Parameters: fan_in = tensor.size(1),
    std = sqrt(2 / fan_in)."""
    kW, ka = jax.random.split(key)
    W = jax.random.normal(kW, (num_inputs + 1, m), jnp.float32) * jnp.sqrt(2.0 / m)
    a = jax.random.normal(ka, (m, outputs), jnp.float32) * jnp.sqrt(2.0 / outputs)
    return W, a


def _reference(x, W, a):
    ones = jnp.ones((x.shape[0], 1), dtype=x.dtype)
    x_aug = jnp.concatenate([x, ones], axis=1)
    return jnp.maximum(x_aug @ W, 0.0) @ a


if __name__ == "__main__":
    key = jax.random.PRNGKey(0)
    k_x1, k_x2, k_x3, k_p1, k_p2 = jax.random.split(key, 5)

    # Default module config: inputs=1, outputs=10.
    m, num_inputs, outputs = 32, 1, 10
    W, a = init_params(k_p1, m, num_inputs, outputs)

    # Small batch: single-block degenerate grid path (exact f32).
    N1 = 64
    x1 = jax.random.normal(k_x1, (N1, num_inputs), dtype=jnp.float32)
    out1 = jax.block_until_ready(classification_forward(x1, W, a))
    assert out1.shape == (N1, outputs)
    assert jnp.allclose(out1, _reference(x1, W, a), atol=1e-4, rtol=1e-4)

    # Larger batch with a small tile cap: multi-step pipelined grid + padding,
    # and the no-transpose (outputs, N) output layout.
    N2 = 1500
    x2 = jax.random.normal(k_x2, (N2, num_inputs), dtype=jnp.float32)
    out2_t = jax.block_until_ready(
        classification_forward(x2, W, a, tile_n=512, transpose_output=False))
    assert out2_t.shape == (outputs, N2)
    assert jnp.allclose(out2_t.T, _reference(x2, W, a), atol=1e-4, rtol=1e-4)

    # Multi-feature input (inputs=3) exercising the stage-1 FMA loop and the
    # opt-in bf16 stage-2 multiplies (f32 accumulation) for v6e/v7x.
    m3, in3 = 64, 3
    W3, a3 = init_params(k_p2, m3, in3, outputs)
    N3 = 1024
    x3 = jax.random.normal(k_x3, (N3, in3), dtype=jnp.float32)
    out3 = jax.block_until_ready(
        classification_forward(x3, W3, a3, stage2_bf16=True))
    assert out3.shape == (N3, outputs)
    assert jnp.allclose(out3, _reference(x3, W3, a3), atol=5e-2, rtol=5e-2)

    print("KERNEL_OK")
</pallas_src>

<mosaic_0001>
module attributes {stable_mosaic.version = 11 : i64} {
  func.func @_clf_kernel(%arg0: i32, %arg1: memref<1x512xf32, #tpu.memory_space<vmem>>, %arg2: memref<32x2xf32, #tpu.memory_space<vmem>>, %arg3: memref<32x10xf32, #tpu.memory_space<vmem>>, %arg4: memref<10x512xf32, #tpu.memory_space<vmem>>) attributes {dimension_semantics = [#tpu.dimension_semantics<parallel>], iteration_bounds = array<i64: 1>, scalar_prefetch = 0 : i64, scratch_operands = 0 : i64, tpu.core_type = #tpu.core_type<tc>, window_params = [{transform_indices = @transform_0, window_bounds = array<i64: 1, 512>}, {pipeline_mode = #tpu.pipeline_mode<synchronous>, transform_indices = @transform_1, window_bounds = array<i64: 32, 2>}, {pipeline_mode = #tpu.pipeline_mode<synchronous>, transform_indices = @transform_2, window_bounds = array<i64: 32, 10>}, {transform_indices = @transform_3, window_bounds = array<i64: 10, 512>}]} {
    %c0 = arith.constant 0 : index
    %c0_0 = arith.constant 0 : index
    %0 = vector.load %arg2[%c0, %c0_0] : memref<32x2xf32, #tpu.memory_space<vmem>>, vector<32x2xf32>
    %c0_1 = arith.constant 0 : index
    %c0_2 = arith.constant 0 : index
    %1 = vector.load %arg3[%c0_1, %c0_2] : memref<32x10xf32, #tpu.memory_space<vmem>>, vector<32x10xf32>
    %2 = vector.extract_strided_slice %0 {offsets = [0, 0], sizes = [32, 1], strides = [1, 1]} : vector<32x2xf32> to vector<32x1xf32>
    %3 = vector.extract_strided_slice %0 {offsets = [0, 1], sizes = [32, 1], strides = [1, 1]} : vector<32x2xf32> to vector<32x1xf32>
    %4 = vector.extract_strided_slice %1 {offsets = [0, 0], sizes = [32, 1], strides = [1, 1]} : vector<32x10xf32> to vector<32x1xf32>
    %5 = vector.extract_strided_slice %1 {offsets = [0, 1], sizes = [32, 1], strides = [1, 1]} : vector<32x10xf32> to vector<32x1xf32>
    %6 = vector.extract_strided_slice %1 {offsets = [0, 2], sizes = [32, 1], strides = [1, 1]} : vector<32x10xf32> to vector<32x1xf32>
    %7 = vector.extract_strided_slice %1 {offsets = [0, 3], sizes = [32, 1], strides = [1, 1]} : vector<32x10xf32> to vector<32x1xf32>
    %8 = vector.extract_strided_slice %1 {offsets = [0, 4], sizes = [32, 1], strides = [1, 1]} : vector<32x10xf32> to vector<32x1xf32>
    %9 = vector.extract_strided_slice %1 {offsets = [0, 5], sizes = [32, 1], strides = [1, 1]} : vector<32x10xf32> to vector<32x1xf32>
    %10 = vector.extract_strided_slice %1 {offsets = [0, 6], sizes = [32, 1], strides = [1, 1]} : vector<32x10xf32> to vector<32x1xf32>
    %11 = vector.extract_strided_slice %1 {offsets = [0, 7], sizes = [32, 1], strides = [1, 1]} : vector<32x10xf32> to vector<32x1xf32>
    %12 = vector.extract_strided_slice %1 {offsets = [0, 8], sizes = [32, 1], strides = [1, 1]} : vector<32x10xf32> to vector<32x1xf32>
    %13 = vector.extract_strided_slice %1 {offsets = [0, 9], sizes = [32, 1], strides = [1, 1]} : vector<32x10xf32> to vector<32x1xf32>
    %c0_i32 = arith.constant 0 : i32
    %c512_i32 = arith.constant 512 : i32
    %14 = arith.muli %c0_i32, %c512_i32 : i32
    %15 = tpu.assume_multiple %14, 512 : i32
    %c0_3 = arith.constant 0 : index
    %16 = arith.index_cast %15 : i32 to index
    %17 = vector.load %arg1[%c0_3, %16] : memref<1x512xf32, #tpu.memory_space<vmem>>, vector<1x512xf32>
    %18 = vector.broadcast %2 : vector<32x1xf32> to vector<32x512xf32>
    %19 = vector.broadcast %17 : vector<1x512xf32> to vector<32x512xf32>
    %20 = arith.mulf %18, %19 : vector<32x512xf32>
    %21 = vector.broadcast %3 : vector<32x1xf32> to vector<32x512xf32>
    %22 = arith.addf %20, %21 : vector<32x512xf32>
    %cst = arith.constant 0.000000e+00 : f32
    %23 = vector.broadcast %cst : f32 to vector<32x512xf32>
    %24 = arith.maximumf %22, %23 : vector<32x512xf32>
    %25 = vector.broadcast %4 : vector<32x1xf32> to vector<32x512xf32>
    %26 = arith.mulf %25, %24 : vector<32x512xf32>
    %cst_4 = arith.constant dense<0.000000e+00> : vector<512xf32>
    %27 = vector.multi_reduction <add>, %26, %cst_4 [0] : vector<32x512xf32> to vector<512xf32>
    %28 = vector.shape_cast %27 : vector<512xf32> to vector<1x512xf32>
    %c0_5 = arith.constant 0 : index
    %29 = arith.index_cast %15 : i32 to index
    %30 = vector.load %arg4[%c0_5, %29] : memref<10x512xf32, #tpu.memory_space<vmem>>, vector<1x512xf32>
    tpu.vector_store %arg4[%c0_5, %29], %28 {strides = array<i32>} : memref<10x512xf32, #tpu.memory_space<vmem>>, vector<1x512xf32>,
    %31 = vector.broadcast %5 : vector<32x1xf32> to vector<32x512xf32>
    %32 = arith.mulf %31, %24 : vector<32x512xf32>
    %cst_6 = arith.constant dense<0.000000e+00> : vector<512xf32>
    %33 = vector.multi_reduction <add>, %32, %cst_6 [0] : vector<32x512xf32> to vector<512xf32>
    %34 = vector.shape_cast %33 : vector<512xf32> to vector<1x512xf32>
    %c1 = arith.constant 1 : index
    %35 = arith.index_cast %15 : i32 to index
    %36 = vector.load %arg4[%c1, %35] : memref<10x512xf32, #tpu.memory_space<vmem>>, vector<1x512xf32>
    tpu.vector_store %arg4[%c1, %35], %34 {strides = array<i32>} : memref<10x512xf32, #tpu.memory_space<vmem>>, vector<1x512xf32>,
    %37 = vector.broadcast %6 : vector<32x1xf32> to vector<32x512xf32>
    %38 = arith.mulf %37, %24 : vector<32x512xf32>
    %cst_7 = arith.constant dense<0.000000e+00> : vector<512xf32>
    %39 = vector.multi_reduction <add>, %38, %cst_7 [0] : vector<32x512xf32> to vector<512xf32>
    %40 = vector.shape_cast %39 : vector<512xf32> to vector<1x512xf32>
    %c2 = arith.constant 2 : index
    %41 = arith.index_cast %15 : i32 to index
    %42 = vector.load %arg4[%c2, %41] : memref<10x512xf32, #tpu.memory_space<vmem>>, vector<1x512xf32>
    tpu.vector_store %arg4[%c2, %41], %40 {strides = array<i32>} : memref<10x512xf32, #tpu.memory_space<vmem>>, vector<1x512xf32>,
    %43 = vector.broadcast %7 : vector<32x1xf32> to vector<32x512xf32>
    %44 = arith.mulf %43, %24 : vector<32x512xf32>
    %cst_8 = arith.constant dense<0.000000e+00> : vector<512xf32>
    %45 = vector.multi_reduction <add>, %44, %cst_8 [0] : vector<32x512xf32> to vector<512xf32>
    %46 = vector.shape_cast %45 : vector<512xf32> to vector<1x512xf32>
    %c3 = arith.constant 3 : index
    %47 = arith.index_cast %15 : i32 to index
    %48 = vector.load %arg4[%c3, %47] : memref<10x512xf32, #tpu.memory_space<vmem>>, vector<1x512xf32>
    tpu.vector_store %arg4[%c3, %47], %46 {strides = array<i32>} : memref<10x512xf32, #tpu.memory_space<vmem>>, vector<1x512xf32>,
    %49 = vector.broadcast %8 : vector<32x1xf32> to vector<32x512xf32>
    %50 = arith.mulf %49, %24 : vector<32x512xf32>
    %cst_9 = arith.constant dense<0.000000e+00> : vector<512xf32>
    %51 = vector.multi_reduction <add>, %50, %cst_9 [0] : vector<32x512xf32> to vector<512xf32>
    %52 = vector.shape_cast %51 : vector<512xf32> to vector<1x512xf32>
    %c4 = arith.constant 4 : index
    %53 = arith.index_cast %15 : i32 to index
    %54 = vector.load %arg4[%c4, %53] : memref<10x512xf32, #tpu.memory_space<vmem>>, vector<1x512xf32>
    tpu.vector_store %arg4[%c4, %53], %52 {strides = array<i32>} : memref<10x512xf32, #tpu.memory_space<vmem>>, vector<1x512xf32>,
    %55 = vector.broadcast %9 : vector<32x1xf32> to vector<32x512xf32>
    %56 = arith.mulf %55, %24 : vector<32x512xf32>
    %cst_10 = arith.constant dense<0.000000e+00> : vector<512xf32>
    %57 = vector.multi_reduction <add>, %56, %cst_10 [0] : vector<32x512xf32> to vector<512xf32>
    %58 = vector.shape_cast %57 : vector<512xf32> to vector<1x512xf32>
    %c5 = arith.constant 5 : index
    %59 = arith.index_cast %15 : i32 to index
    %60 = vector.load %arg4[%c5, %59] : memref<10x512xf32, #tpu.memory_space<vmem>>, vector<1x512xf32>
    tpu.vector_store %arg4[%c5, %59], %58 {strides = array<i32>} : memref<10x512xf32, #tpu.memory_space<vmem>>, vector<1x512xf32>,
    %61 = vector.broadcast %10 : vector<32x1xf32> to vector<32x512xf32>
    %62 = arith.mulf %61, %24 : vector<32x512xf32>
    %cst_11 = arith.constant dense<0.000000e+00> : vector<512xf32>
    %63 = vector.multi_reduction <add>, %62, %cst_11 [0] : vector<32x512xf32> to vector<512xf32>
    %64 = vector.shape_cast %63 : vector<512xf32> to vector<1x512xf32>
    %c6 = arith.constant 6 : index
    %65 = arith.index_cast %15 : i32 to index
    %66 = vector.load %arg4[%c6, %65] : memref<10x512xf32, #tpu.memory_space<vmem>>, vector<1x512xf32>
    tpu.vector_store %arg4[%c6, %65], %64 {strides = array<i32>} : memref<10x512xf32, #tpu.memory_space<vmem>>, vector<1x512xf32>,
    %67 = vector.broadcast %11 : vector<32x1xf32> to vector<32x512xf32>
    %68 = arith.mulf %67, %24 : vector<32x512xf32>
    %cst_12 = arith.constant dense<0.000000e+00> : vector<512xf32>
    %69 = vector.multi_reduction <add>, %68, %cst_12 [0] : vector<32x512xf32> to vector<512xf32>
    %70 = vector.shape_cast %69 : vector<512xf32> to vector<1x512xf32>
    %c7 = arith.constant 7 : index
    %71 = arith.index_cast %15 : i32 to index
    %72 = vector.load %arg4[%c7, %71] : memref<10x512xf32, #tpu.memory_space<vmem>>, vector<1x512xf32>
    tpu.vector_store %arg4[%c7, %71], %70 {strides = array<i32>} : memref<10x512xf32, #tpu.memory_space<vmem>>, vector<1x512xf32>,
    %73 = vector.broadcast %12 : vector<32x1xf32> to vector<32x512xf32>
    %74 = arith.mulf %73, %24 : vector<32x512xf32>
    %cst_13 = arith.constant dense<0.000000e+00> : vector<512xf32>
    %75 = vector.multi_reduction <add>, %74, %cst_13 [0] : vector<32x512xf32> to vector<512xf32>
    %76 = vector.shape_cast %75 : vector<512xf32> to vector<1x512xf32>
    %c8 = arith.constant 8 : index
    %77 = arith.index_cast %15 : i32 to index
    %78 = vector.load %arg4[%c8, %77] : memref<10x512xf32, #tpu.memory_space<vmem>>, vector<1x512xf32>
    tpu.vector_store %arg4[%c8, %77], %76 {strides = array<i32>} : memref<10x512xf32, #tpu.memory_space<vmem>>, vector<1x512xf32>,
    %79 = vector.broadcast %13 : vector<32x1xf32> to vector<32x512xf32>
    %80 = arith.mulf %79, %24 : vector<32x512xf32>
    %cst_14 = arith.constant dense<0.000000e+00> : vector<512xf32>
    %81 = vector.multi_reduction <add>, %80, %cst_14 [0] : vector<32x512xf32> to vector<512xf32>
    %82 = vector.shape_cast %81 : vector<512xf32> to vector<1x512xf32>
    %c9 = arith.constant 9 : index
    %83 = arith.index_cast %15 : i32 to index
    %84 = vector.load %arg4[%c9, %83] : memref<10x512xf32, #tpu.memory_space<vmem>>, vector<1x512xf32>
    tpu.vector_store %arg4[%c9, %83], %82 {strides = array<i32>} : memref<10x512xf32, #tpu.memory_space<vmem>>, vector<1x512xf32>,
    %c1_i32 = arith.constant 1 : i32
    return
  }
  func.func @transform_0(%arg0: i32) -> (i32, i32) {
    %c0_i32 = arith.constant 0 : i32
    %c0_i32_0 = arith.constant 0 : i32
    return %c0_i32, %arg0 : i32, i32
  }
  func.func @transform_1(%arg0: i32) -> (i32, i32) {
    %c0_i32 = arith.constant 0 : i32
    %c0_i32_0 = arith.constant 0 : i32
    %c0_i32_1 = arith.constant 0 : i32
    return %c0_i32, %c0_i32_0 : i32, i32
  }
  func.func @transform_2(%arg0: i32) -> (i32, i32) {
    %c0_i32 = arith.constant 0 : i32
    %c0_i32_0 = arith.constant 0 : i32
    %c0_i32_1 = arith.constant 0 : i32
    return %c0_i32, %c0_i32_0 : i32, i32
  }
  func.func @transform_3(%arg0: i32) -> (i32, i32) {
    %c0_i32 = arith.constant 0 : i32
    %c0_i32_0 = arith.constant 0 : i32
    return %c0_i32, %arg0 : i32, i32
  }
}

</mosaic_0001>

<llo_original>
// kernel: tpu_custom_call.1
$region0: #{tpu_custom_call.1}
  #allocation0 [shape = 'u32[]', space=smem, size = 0x4, offset = 0x4, fixed_abs, tag = 'smem constant byte address 0x4 - core index']
  #allocation1 [shape = 'u32[144,128]{1,0:T(1,128)}', space=vmem, size = 0x12000, scoped, tag = 'internal scratch']
  %s0 = inlined_call_operand.vmem [shape: f32[1,512], index: 0, kind: input, shape index: {}]
  %s1 = inlined_call_operand.vmem [shape: f32[32,2], index: 1, kind: input, shape index: {}]
  %s2 = inlined_call_operand.vmem [shape: f32[32,10], index: 2, kind: input, shape index: {}]
  %s3 = inlined_call_operand.hbm [shape: f32[10,512], index: 3, kind: output, shape index: {}]
  %s4 = sld [smem:[#allocation0]]
  $region22: #{tpu_custom_call.1} parent=0
    _
  %s6 = ssub.s32 1, %s4
  %s7 = scalar_select 0, %s6, %s4
  $region1: #{tpu_custom_call.1} parent=0
    #allocation2 [shape = 'u8[32768]{0}', space=vmem, size = 0x8000, scoped, tag = 'output window, operand 0, single buffered']
    #allocation3 [shape = 's32[1]{0}', space=sflag, size = 0x4, scoped, tag = 'scoped memory for tpu_custom_call.1']
    %8 = vsyncpa [#allocation3], 0
    // Predicated region
    $region2: #{tpu_custom_call.1} parent=1 // pred_check
      _
    $region3: #{tpu_custom_call.1} parent=1 // pred_check_branch
      %10 = sbr.rel (0) target = $region5
    $region4: #{tpu_custom_call.1} parent=1 // pred_region
      _
    $region5: #{tpu_custom_call.1} parent=1 // pred_fallthru
      _
    // Predicated region
    $region6: #{tpu_custom_call.1} parent=1 // pred_check
      _
    $region7: #{tpu_custom_call.1} parent=1 // pred_check_branch
      %12 = sbr.rel (0) target = $region9
    $region8: #{tpu_custom_call.1} parent=1 // pred_region
      _
    $region9: #{tpu_custom_call.1} parent=1 // pred_fallthru
      _
    // Predicated region
    $region10: #{tpu_custom_call.1} parent=1 // pred_check
      _
    $region11: #{tpu_custom_call.1} parent=1 // pred_check_branch
      %14 = sbr.rel (0) target = $region13
    $region12: #{tpu_custom_call.1} parent=1 // pred_region
      _
    $region13: #{tpu_custom_call.1} parent=1 // pred_fallthru
      _
    %v15 = vld [vmem:[%s1] sm:$0xff]
    %v16 = vld [vmem:[%s1 + $0x8] sm:$0xff]
    %v17 = vld [vmem:[%s1 + $0x10] sm:$0xff]
    %v18 = vld [vmem:[%s1 + $0x18] sm:$0xff]
    %v19 = vld [vmem:[%s2] sm:$0xff]
    %v20 = vld [vmem:[%s2 + $0x8] sm:$0xff]
    %v21 = vld [vmem:[%s2 + $0x10] sm:$0xff]
    %v22 = vld [vmem:[%s2 + $0x18] sm:$0xff]
    %v23 = vld [vmem:[%s0] sm:$0xf]
    %25 = vset.pattern.permute.xlu0 0
    %26 = vperm.xlu0 %25, %v15
    %v27 = vpop.permute.xlu0 %26
    %30 = vset.pattern.permute.xlu0 0
    %31 = vperm.xlu0 %30, %v16
    %v32 = vpop.permute.xlu0 %31
    %35 = vset.pattern.permute.xlu0 0
    %36 = vperm.xlu0 %35, %v17
    %v37 = vpop.permute.xlu0 %36
    %40 = vset.pattern.permute.xlu0 0
    %41 = vperm.xlu0 %40, %v18
    %v42 = vpop.permute.xlu0 %41
    %v45 = vlaneseq
    %v46 = vshrl.u32 %v45, 7
    %v47 = vsub.s32 0, %v46
    %v48 = vrot.slane %v23, %v47
    %v49 = vlaneseq
    %v50 = vshrl.u32 %v49, 7
    %v51 = vsub.s32 1, %v50
    %v52 = vrot.slane %v23, %v51
    %v53 = vlaneseq
    %v54 = vshrl.u32 %v53, 7
    %v55 = vsub.s32 2, %v54
    %v56 = vrot.slane %v23, %v55
    %v57 = vlaneseq
    %v58 = vshrl.u32 %v57, 7
    %v59 = vsub.s32 3, %v58
    %v60 = vrot.slane %v23, %v59
    %v65 = vmul.f32 %v27, %v48
    %v66 = vmul.f32 %v27, %v52
    %v67 = vmul.f32 %v27, %v56
    %v68 = vmul.f32 %v27, %v60
    %v69 = vmul.f32 %v32, %v48
    %v70 = vmul.f32 %v32, %v52
    %v71 = vmul.f32 %v32, %v56
    %v72 = vmul.f32 %v32, %v60
    %v73 = vmul.f32 %v37, %v48
    %v74 = vmul.f32 %v37, %v52
    %v75 = vmul.f32 %v37, %v56
    %v76 = vmul.f32 %v37, %v60
    %v77 = vmul.f32 %v42, %v48
    %v78 = vmul.f32 %v42, %v52
    %v79 = vmul.f32 %v42, %v56
    %v80 = vmul.f32 %v42, %v60
    %81 = vset.pattern.permute.xlu0 1
    %82 = vperm.xlu0 %81, %v15
    %v83 = vpop.permute.xlu0 %82
    %85 = vset.pattern.permute.xlu0 1
    %86 = vperm.xlu0 %85, %v16
    %v87 = vpop.permute.xlu0 %86
    %89 = vset.pattern.permute.xlu0 1
    %90 = vperm.xlu0 %89, %v17
    %v91 = vpop.permute.xlu0 %90
    %93 = vset.pattern.permute.xlu0 1
    %94 = vperm.xlu0 %93, %v18
    %v95 = vpop.permute.xlu0 %94
    %v97 = vadd.f32 %v65, %v83
    %v98 = vadd.f32 %v66, %v83
    %v99 = vadd.f32 %v67, %v83
    %v100 = vadd.f32 %v68, %v83
    %v101 = vadd.f32 %v69, %v87
    %v102 = vadd.f32 %v70, %v87
    %v103 = vadd.f32 %v71, %v87
    %v104 = vadd.f32 %v72, %v87
    %v105 = vadd.f32 %v73, %v91
    %v106 = vadd.f32 %v74, %v91
    %v107 = vadd.f32 %v75, %v91
    %v108 = vadd.f32 %v76, %v91
    %v109 = vadd.f32 %v77, %v95
    %v110 = vadd.f32 %v78, %v95
    %v111 = vadd.f32 %v79, %v95
    %v112 = vadd.f32 %v80, %v95
    %v113 = vmax.f32 %v97, 0.0
    %v114 = vmax.f32 %v98, 0.0
    %v115 = vmax.f32 %v99, 0.0
    %v116 = vmax.f32 %v100, 0.0
    %v117 = vmax.f32 %v101, 0.0
    %v118 = vmax.f32 %v102, 0.0
    %v119 = vmax.f32 %v103, 0.0
    %v120 = vmax.f32 %v104, 0.0
    %v121 = vmax.f32 %v105, 0.0
    %v122 = vmax.f32 %v106, 0.0
    %v123 = vmax.f32 %v107, 0.0
    %v124 = vmax.f32 %v108, 0.0
    %v125 = vmax.f32 %v109, 0.0
    %v126 = vmax.f32 %v110, 0.0
    %v127 = vmax.f32 %v111, 0.0
    %v128 = vmax.f32 %v112, 0.0
    %130 = vset.pattern.permute.xlu0 0
    %131 = vperm.xlu0 %130, %v19
    %v132 = vpop.permute.xlu0 %131
    %135 = vset.pattern.permute.xlu0 0
    %136 = vperm.xlu0 %135, %v20
    %v137 = vpop.permute.xlu0 %136
    %140 = vset.pattern.permute.xlu0 0
    %141 = vperm.xlu0 %140, %v21
    %v142 = vpop.permute.xlu0 %141
    %145 = vset.pattern.permute.xlu0 0
    %146 = vperm.xlu0 %145, %v22
    %v147 = vpop.permute.xlu0 %146
    %v149 = vmul.f32 %v132, %v113
    %v150 = vmul.f32 %v132, %v114
    %v151 = vmul.f32 %v132, %v115
    %v152 = vmul.f32 %v132, %v116
    %v153 = vmul.f32 %v137, %v117
    %v154 = vmul.f32 %v137, %v118
    %v155 = vmul.f32 %v137, %v119
    %v156 = vmul.f32 %v137, %v120
    %v157 = vmul.f32 %v142, %v121
    %v158 = vmul.f32 %v142, %v122
    %v159 = vmul.f32 %v142, %v123
    %v160 = vmul.f32 %v142, %v124
    %v161 = vmul.f32 %v147, %v125
    %v162 = vmul.f32 %v147, %v126
    %v163 = vmul.f32 %v147, %v127
    %v164 = vmul.f32 %v147, %v128
    %v165 = vadd.f32 %v149, %v153
    %v166 = vadd.f32 %v165, %v157
    %v167 = vadd.f32 %v166, %v161
    %v168 = vrot.slane %v167, 4
    %v169 = vadd.f32 %v167, %v168
    %v170 = vrot.slane %v169, 2
    %v171 = vadd.f32 %v169, %v170
    %v172 = vrot.slane %v171, 1
    %v173 = vadd.f32 %v171, %v172
    %v174 = vadd.f32 %v150, %v154
    %v175 = vadd.f32 %v174, %v158
    %v176 = vadd.f32 %v175, %v162
    %v177 = vrot.slane %v176, 4
    %v178 = vadd.f32 %v176, %v177
    %v179 = vrot.slane %v178, 2
    %v180 = vadd.f32 %v178, %v179
    %v181 = vrot.slane %v180, 1
    %v182 = vadd.f32 %v180, %v181
    %v183 = vadd.f32 %v151, %v155
    %v184 = vadd.f32 %v183, %v159
    %v185 = vadd.f32 %v184, %v163
    %v186 = vrot.slane %v185, 4
    %v187 = vadd.f32 %v185, %v186
    %v188 = vrot.slane %v187, 2
    %v189 = vadd.f32 %v187, %v188
    %v190 = vrot.slane %v189, 1
    %v191 = vadd.f32 %v189, %v190
    %v192 = vadd.f32 %v152, %v156
    %v193 = vadd.f32 %v192, %v160
    %v194 = vadd.f32 %v193, %v164
    %v195 = vrot.slane %v194, 4
    %v196 = vadd.f32 %v194, %v195
    %v197 = vrot.slane %v196, 2
    %v198 = vadd.f32 %v196, %v197
    %v199 = vrot.slane %v198, 1
    %v200 = vadd.f32 %v198, %v199
    %v205 = vcombine.low %v173, %v182
    %v206 = vcombine.low %v191, %v200
    %v208 = vunpack.c.l.s4 1966171168
    %v209 = vunpack.c.0.s8 %v208
    %v210 = vlaneseq
    %v211 = vshrl.u32 %v210, 7
    %v212 = vsub.s32 %v209, %v211
    %v213 = vrot.slane %v205, %v212
    %v215 = vunpack.c.l.s4 1966171168
    %v216 = vunpack.c.0.s8 %v215
    %v217 = vlaneseq
    %v218 = vshrl.u32 %v217, 7
    %v219 = vsub.s32 %v216, %v218
    %v220 = vrot.slane %v206, %v219
    %v221 = vcombine.low %v213, %v220
    %v223 = vunpack.c.l.s4 1966171168
    %v224 = vunpack.c.0.s8 %v223
    %v225 = vlaneseq
    %v226 = vshrl.u32 %v225, 7
    %v227 = vsub.s32 %v224, %v226
    %v228 = vrot.slane %v221, %v227
    %v230 = vlaneseq
    %vm231 = vcmp.ge.s32.totalorder %v230, 0
    %vm232 = vcmp.lt.s32.totalorder %v230, 512
    %vm233 = vmand %vm231, %vm232
    %234 = vst.msk [vmem:[#allocation2] ss:$8 sm:$0xf] %vm233, %v228
    %235 = vst.msk [vmem:[#allocation2] ss:$8 sm:$0x0] %vm233, %v228
    %236 = vset.pattern.permute.xlu0 1
    %237 = vperm.xlu0 %236, %v19
    %v238 = vpop.permute.xlu0 %237
    %240 = vset.pattern.permute.xlu0 1
    %241 = vperm.xlu0 %240, %v20
    %v242 = vpop.permute.xlu0 %241
    %244 = vset.pattern.permute.xlu0 1
    %245 = vperm.xlu0 %244, %v21
    %v246 = vpop.permute.xlu0 %245
    %248 = vset.pattern.permute.xlu0 1
    %249 = vperm.xlu0 %248, %v22
    %v250 = vpop.permute.xlu0 %249
    %v252 = vmul.f32 %v238, %v113
    %v253 = vmul.f32 %v238, %v114
    %v254 = vmul.f32 %v238, %v115
    %v255 = vmul.f32 %v238, %v116
    %v256 = vmul.f32 %v242, %v117
    %v257 = vmul.f32 %v242, %v118
    %v258 = vmul.f32 %v242, %v119
    %v259 = vmul.f32 %v242, %v120
    %v260 = vmul.f32 %v246, %v121
    %v261 = vmul.f32 %v246, %v122
    %v262 = vmul.f32 %v246, %v123
    %v263 = vmul.f32 %v246, %v124
    %v264 = vmul.f32 %v250, %v125
    %v265 = vmul.f32 %v250, %v126
    %v266 = vmul.f32 %v250, %v127
    %v267 = vmul.f32 %v250, %v128
    %v268 = vadd.f32 %v252, %v256
    %v269 = vadd.f32 %v268, %v260
    %v270 = vadd.f32 %v269, %v264
    %v271 = vrot.slane %v270, 4
    %v272 = vadd.f32 %v270, %v271
    %v273 = vrot.slane %v272, 2
    %v274 = vadd.f32 %v272, %v273
    %v275 = vrot.slane %v274, 1
    %v276 = vadd.f32 %v274, %v275
    %v277 = vadd.f32 %v253, %v257
    %v278 = vadd.f32 %v277, %v261
    %v279 = vadd.f32 %v278, %v265
    %v280 = vrot.slane %v279, 4
    %v281 = vadd.f32 %v279, %v280
    %v282 = vrot.slane %v281, 2
    %v283 = vadd.f32 %v281, %v282
    %v284 = vrot.slane %v283, 1
    %v285 = vadd.f32 %v283, %v284
    %v286 = vadd.f32 %v254, %v258
    %v287 = vadd.f32 %v286, %v262
    %v288 = vadd.f32 %v287, %v266
    %v289 = vrot.slane %v288, 4
    %v290 = vadd.f32 %v288, %v289
    %v291 = vrot.slane %v290, 2
    %v292 = vadd.f32 %v290, %v291
    %v293 = vrot.slane %v292, 1
    %v294 = vadd.f32 %v292, %v293
    %v295 = vadd.f32 %v255, %v259
    %v296 = vadd.f32 %v295, %v263
    %v297 = vadd.f32 %v296, %v267
    %v298 = vrot.slane %v297, 4
    %v299 = vadd.f32 %v297, %v298
    %v300 = vrot.slane %v299, 2
    %v301 = vadd.f32 %v299, %v300
    %v302 = vrot.slane %v301, 1
    %v303 = vadd.f32 %v301, %v302
    %v308 = vcombine.low %v276, %v285
    %v309 = vcombine.low %v294, %v303
    %v311 = vunpack.c.l.s4 1966171168
    %v312 = vunpack.c.0.s8 %v311
    %v313 = vlaneseq
    %v314 = vshrl.u32 %v313, 7
    %v315 = vsub.s32 %v312, %v314
    %v316 = vrot.slane %v308, %v315
    %v318 = vunpack.c.l.s4 1966171168
    %v319 = vunpack.c.0.s8 %v318
    %v320 = vlaneseq
    %v321 = vshrl.u32 %v320, 7
    %v322 = vsub.s32 %v319, %v321
    %v323 = vrot.slane %v309, %v322
    %v324 = vcombine.low %v316, %v323
    %v326 = vunpack.c.l.s4 1966171168
    %v327 = vunpack.c.0.s8 %v326
    %v328 = vlaneseq
    %v329 = vshrl.u32 %v328, 7
    %v330 = vsub.s32 %v327, %v329
    %v331 = vrot.slane %v324, %v330
    %s333 = scalar_lea.vmem [#allocation2], 1
    %334 = vst.msk [vmem:[%s333] ss:$8 sm:$0xf] %vm233, %v331
    %335 = vst.msk [vmem:[%s333] ss:$8 sm:$0x0] %vm233, %v331
    %336 = vset.pattern.permute.xlu0 2
    %337 = vperm.xlu0 %336, %v19
    %v338 = vpop.permute.xlu0 %337
    %340 = vset.pattern.permute.xlu0 2
    %341 = vperm.xlu0 %340, %v20
    %v342 = vpop.permute.xlu0 %341
    %344 = vset.pattern.permute.xlu0 2
    %345 = vperm.xlu0 %344, %v21
    %v346 = vpop.permute.xlu0 %345
    %348 = vset.pattern.permute.xlu0 2
    %349 = vperm.xlu0 %348, %v22
    %v350 = vpop.permute.xlu0 %349
    %v352 = vmul.f32 %v338, %v113
    %v353 = vmul.f32 %v338, %v114
    %v354 = vmul.f32 %v338, %v115
    %v355 = vmul.f32 %v338, %v116
    %v356 = vmul.f32 %v342, %v117
    %v357 = vmul.f32 %v342, %v118
    %v358 = vmul.f32 %v342, %v119
    %v359 = vmul.f32 %v342, %v120
    %v360 = vmul.f32 %v346, %v121
    %v361 = vmul.f32 %v346, %v122
    %v362 = vmul.f32 %v346, %v123
    %v363 = vmul.f32 %v346, %v124
    %v364 = vmul.f32 %v350, %v125
    %v365 = vmul.f32 %v350, %v126
    %v366 = vmul.f32 %v350, %v127
    %v367 = vmul.f32 %v350, %v128
    %v368 = vadd.f32 %v352, %v356
    %v369 = vadd.f32 %v368, %v360
    %v370 = vadd.f32 %v369, %v364
    %v371 = vrot.slane %v370, 4
    %v372 = vadd.f32 %v370, %v371
    %v373 = vrot.slane %v372, 2
    %v374 = vadd.f32 %v372, %v373
    %v375 = vrot.slane %v374, 1
    %v376 = vadd.f32 %v374, %v375
    %v377 = vadd.f32 %v353, %v357
    %v378 = vadd.f32 %v377, %v361
    %v379 = vadd.f32 %v378, %v365
    %v380 = vrot.slane %v379, 4
    %v381 = vadd.f32 %v379, %v380
    %v382 = vrot.slane %v381, 2
    %v383 = vadd.f32 %v381, %v382
    %v384 = vrot.slane %v383, 1
    %v385 = vadd.f32 %v383, %v384
    %v386 = vadd.f32 %v354, %v358
    %v387 = vadd.f32 %v386, %v362
    %v388 = vadd.f32 %v387, %v366
    %v389 = vrot.slane %v388, 4
    %v390 = vadd.f32 %v388, %v389
    %v391 = vrot.slane %v390, 2
    %v392 = vadd.f32 %v390, %v391
    %v393 = vrot.slane %v392, 1
    %v394 = vadd.f32 %v392, %v393
    %v395 = vadd.f32 %v355, %v359
    %v396 = vadd.f32 %v395, %v363
    %v397 = vadd.f32 %v396, %v367
    %v398 = vrot.slane %v397, 4
    %v399 = vadd.f32 %v397, %v398
    %v400 = vrot.slane %v399, 2
    %v401 = vadd.f32 %v399, %v400
    %v402 = vrot.slane %v401, 1
    %v403 = vadd.f32 %v401, %v402
    %v408 = vcombine.low %v376, %v385
    %v409 = vcombine.low %v394, %v403
    %v411 = vunpack.c.l.s4 1966171168
    %v412 = vunpack.c.0.s8 %v411
    %v413 = vlaneseq
    %v414 = vshrl.u32 %v413, 7
    %v415 = vsub.s32 %v412, %v414
    %v416 = vrot.slane %v408, %v415
    %v418 = vunpack.c.l.s4 1966171168
    %v419 = vunpack.c.0.s8 %v418
    %v420 = vlaneseq
    %v421 = vshrl.u32 %v420, 7
    %v422 = vsub.s32 %v419, %v421
    %v423 = vrot.slane %v409, %v422
    %v424 = vcombine.low %v416, %v423
    %v426 = vunpack.c.l.s4 1966171168
    %v427 = vunpack.c.0.s8 %v426
    %v428 = vlaneseq
    %v429 = vshrl.u32 %v428, 7
    %v430 = vsub.s32 %v427, %v429
    %v431 = vrot.slane %v424, %v430
    %s433 = scalar_lea.vmem [#allocation2], 2
    %434 = vst.msk [vmem:[%s433] ss:$8 sm:$0xf] %vm233, %v431
    %435 = vst.msk [vmem:[%s433] ss:$8 sm:$0x0] %vm233, %v431
    %436 = vset.pattern.permute.xlu0 3
    %437 = vperm.xlu0 %436, %v19
    %v438 = vpop.permute.xlu0 %437
    %440 = vset.pattern.permute.xlu0 3
    %441 = vperm.xlu0 %440, %v20
    %v442 = vpop.permute.xlu0 %441
    %444 = vset.pattern.permute.xlu0 3
    %445 = vperm.xlu0 %444, %v21
    %v446 = vpop.permute.xlu0 %445
    %448 = vset.pattern.permute.xlu0 3
    %449 = vperm.xlu0 %448, %v22
    %v450 = vpop.permute.xlu0 %449
    %v452 = vmul.f32 %v438, %v113
    %v453 = vmul.f32 %v438, %v114
    %v454 = vmul.f32 %v438, %v115
    %v455 = vmul.f32 %v438, %v116
    %v456 = vmul.f32 %v442, %v117
    %v457 = vmul.f32 %v442, %v118
    %v458 = vmul.f32 %v442, %v119
    %v459 = vmul.f32 %v442, %v120
    %v460 = vmul.f32 %v446, %v121
    %v461 = vmul.f32 %v446, %v122
    %v462 = vmul.f32 %v446, %v123
    %v463 = vmul.f32 %v446, %v124
    %v464 = vmul.f32 %v450, %v125
    %v465 = vmul.f32 %v450, %v126
    %v466 = vmul.f32 %v450, %v127
    %v467 = vmul.f32 %v450, %v128
    %v468 = vadd.f32 %v452, %v456
    %v469 = vadd.f32 %v468, %v460
    %v470 = vadd.f32 %v469, %v464
    %v471 = vrot.slane %v470, 4
    %v472 = vadd.f32 %v470, %v471
    %v473 = vrot.slane %v472, 2
    %v474 = vadd.f32 %v472, %v473
    %v475 = vrot.slane %v474, 1
    %v476 = vadd.f32 %v474, %v475
    %v477 = vadd.f32 %v453, %v457
    %v478 = vadd.f32 %v477, %v461
    %v479 = vadd.f32 %v478, %v465
    %v480 = vrot.slane %v479, 4
    %v481 = vadd.f32 %v479, %v480
    %v482 = vrot.slane %v481, 2
    %v483 = vadd.f32 %v481, %v482
    %v484 = vrot.slane %v483, 1
    %v485 = vadd.f32 %v483, %v484
    %v486 = vadd.f32 %v454, %v458
    %v487 = vadd.f32 %v486, %v462
    %v488 = vadd.f32 %v487, %v466
    %v489 = vrot.slane %v488, 4
    %v490 = vadd.f32 %v488, %v489
    %v491 = vrot.slane %v490, 2
    %v492 = vadd.f32 %v490, %v491
    %v493 = vrot.slane %v492, 1
    %v494 = vadd.f32 %v492, %v493
    %v495 = vadd.f32 %v455, %v459
    %v496 = vadd.f32 %v495, %v463
    %v497 = vadd.f32 %v496, %v467
    %v498 = vrot.slane %v497, 4
    %v499 = vadd.f32 %v497, %v498
    %v500 = vrot.slane %v499, 2
    %v501 = vadd.f32 %v499, %v500
    %v502 = vrot.slane %v501, 1
    %v503 = vadd.f32 %v501, %v502
    %v508 = vcombine.low %v476, %v485
    %v509 = vcombine.low %v494, %v503
    %v511 = vunpack.c.l.s4 1966171168
    %v512 = vunpack.c.0.s8 %v511
    %v513 = vlaneseq
    %v514 = vshrl.u32 %v513, 7
    %v515 = vsub.s32 %v512, %v514
    %v516 = vrot.slane %v508, %v515
    %v518 = vunpack.c.l.s4 1966171168
    %v519 = vunpack.c.0.s8 %v518
    %v520 = vlaneseq
    %v521 = vshrl.u32 %v520, 7
    %v522 = vsub.s32 %v519, %v521
    %v523 = vrot.slane %v509, %v522
    %v524 = vcombine.low %v516, %v523
    %v526 = vunpack.c.l.s4 1966171168
    %v527 = vunpack.c.0.s8 %v526
    %v528 = vlaneseq
    %v529 = vshrl.u32 %v528, 7
    %v530 = vsub.s32 %v527, %v529
    %v531 = vrot.slane %v524, %v530
    %s533 = scalar_lea.vmem [#allocation2], 3
    %534 = vst.msk [vmem:[%s533] ss:$8 sm:$0xf] %vm233, %v531
    %535 = vst.msk [vmem:[%s533] ss:$8 sm:$0x0] %vm233, %v531
    %536 = vset.pattern.permute.xlu0 4
    %537 = vperm.xlu0 %536, %v19
    %v538 = vpop.permute.xlu0 %537
    %540 = vset.pattern.permute.xlu0 4
    %541 = vperm.xlu0 %540, %v20
    %v542 = vpop.permute.xlu0 %541
    %544 = vset.pattern.permute.xlu0 4
    %545 = vperm.xlu0 %544, %v21
    %v546 = vpop.permute.xlu0 %545
    %548 = vset.pattern.permute.xlu0 4
    %549 = vperm.xlu0 %548, %v22
    %v550 = vpop.permute.xlu0 %549
    %v552 = vmul.f32 %v538, %v113
    %v553 = vmul.f32 %v538, %v114
    %v554 = vmul.f32 %v538, %v115
    %v555 = vmul.f32 %v538, %v116
    %v556 = vmul.f32 %v542, %v117
    %v557 = vmul.f32 %v542, %v118
    %v558 = vmul.f32 %v542, %v119
    %v559 = vmul.f32 %v542, %v120
    %v560 = vmul.f32 %v546, %v121
    %v561 = vmul.f32 %v546, %v122
    %v562 = vmul.f32 %v546, %v123
    %v563 = vmul.f32 %v546, %v124
    %v564 = vmul.f32 %v550, %v125
    %v565 = vmul.f32 %v550, %v126
    %v566 = vmul.f32 %v550, %v127
    %v567 = vmul.f32 %v550, %v128
    %v568 = vadd.f32 %v552, %v556
    %v569 = vadd.f32 %v568, %v560
    %v570 = vadd.f32 %v569, %v564
    %v571 = vrot.slane %v570, 4
    %v572 = vadd.f32 %v570, %v571
    %v573 = vrot.slane %v572, 2
    %v574 = vadd.f32 %v572, %v573
    %v575 = vrot.slane %v574, 1
    %v576 = vadd.f32 %v574, %v575
    %v577 = vadd.f32 %v553, %v557
    %v578 = vadd.f32 %v577, %v561
    %v579 = vadd.f32 %v578, %v565
    %v580 = vrot.slane %v579, 4
    %v581 = vadd.f32 %v579, %v580
    %v582 = vrot.slane %v581, 2
    %v583 = vadd.f32 %v581, %v582
    %v584 = vrot.slane %v583, 1
    %v585 = vadd.f32 %v583, %v584
    %v586 = vadd.f32 %v554, %v558
    %v587 = vadd.f32 %v586, %v562
    %v588 = vadd.f32 %v587, %v566
    %v589 = vrot.slane %v588, 4
    %v590 = vadd.f32 %v588, %v589
    %v591 = vrot.slane %v590, 2
    %v592 = vadd.f32 %v590, %v591
    %v593 = vrot.slane %v592, 1
    %v594 = vadd.f32 %v592, %v593
    %v595 = vadd.f32 %v555, %v559
    %v596 = vadd.f32 %v595, %v563
    %v597 = vadd.f32 %v596, %v567
    %v598 = vrot.slane %v597, 4
    %v599 = vadd.f32 %v597, %v598
    %v600 = vrot.slane %v599, 2
    %v601 = vadd.f32 %v599, %v600
    %v602 = vrot.slane %v601, 1
    %v603 = vadd.f32 %v601, %v602
    %v608 = vcombine.low %v576, %v585
    %v609 = vcombine.low %v594, %v603
    %v611 = vunpack.c.l.s4 1966171168
    %v612 = vunpack.c.0.s8 %v611
    %v613 = vlaneseq
    %v614 = vshrl.u32 %v613, 7
    %v615 = vsub.s32 %v612, %v614
    %v616 = vrot.slane %v608, %v615
    %v618 = vunpack.c.l.s4 1966171168
    %v619 = vunpack.c.0.s8 %v618
    %v620 = vlaneseq
    %v621 = vshrl.u32 %v620, 7
    %v622 = vsub.s32 %v619, %v621
    %v623 = vrot.slane %v609, %v622
    %v624 = vcombine.low %v616, %v623
    %v626 = vunpack.c.l.s4 1966171168
    %v627 = vunpack.c.0.s8 %v626
    %v628 = vlaneseq
    %v629 = vshrl.u32 %v628, 7
    %v630 = vsub.s32 %v627, %v629
    %v631 = vrot.slane %v624, %v630
    %s633 = scalar_lea.vmem [#allocation2], 4
    %634 = vst.msk [vmem:[%s633] ss:$8 sm:$0xf] %vm233, %v631
    %635 = vst.msk [vmem:[%s633] ss:$8 sm:$0x0] %vm233, %v631
    %636 = vset.pattern.permute.xlu0 5
    %637 = vperm.xlu0 %636, %v19
    %v638 = vpop.permute.xlu0 %637
    %640 = vset.pattern.permute.xlu0 5
    %641 = vperm.xlu0 %640, %v20
    %v642 = vpop.permute.xlu0 %641
    %644 = vset.pattern.permute.xlu0 5
    %645 = vperm.xlu0 %644, %v21
    %v646 = vpop.permute.xlu0 %645
    %648 = vset.pattern.permute.xlu0 5
    %649 = vperm.xlu0 %648, %v22
    %v650 = vpop.permute.xlu0 %649
    %v652 = vmul.f32 %v638, %v113
    %v653 = vmul.f32 %v638, %v114
    %v654 = vmul.f32 %v638, %v115
    %v655 = vmul.f32 %v638, %v116
    %v656 = vmul.f32 %v642, %v117
    %v657 = vmul.f32 %v642, %v118
    %v658 = vmul.f32 %v642, %v119
    %v659 = vmul.f32 %v642, %v120
    %v660 = vmul.f32 %v646, %v121
    %v661 = vmul.f32 %v646, %v122
    %v662 = vmul.f32 %v646, %v123
    %v663 = vmul.f32 %v646, %v124
    %v664 = vmul.f32 %v650, %v125
    %v665 = vmul.f32 %v650, %v126
    %v666 = vmul.f32 %v650, %v127
    %v667 = vmul.f32 %v650, %v128
    %v668 = vadd.f32 %v652, %v656
    %v669 = vadd.f32 %v668, %v660
    %v670 = vadd.f32 %v669, %v664
    %v671 = vrot.slane %v670, 4
    %v672 = vadd.f32 %v670, %v671
    %v673 = vrot.slane %v672, 2
    %v674 = vadd.f32 %v672, %v673
    %v675 = vrot.slane %v674, 1
    %v676 = vadd.f32 %v674, %v675
    %v677 = vadd.f32 %v653, %v657
    %v678 = vadd.f32 %v677, %v661
    %v679 = vadd.f32 %v678, %v665
    %v680 = vrot.slane %v679, 4
    %v681 = vadd.f32 %v679, %v680
    %v682 = vrot.slane %v681, 2
    %v683 = vadd.f32 %v681, %v682
    %v684 = vrot.slane %v683, 1
    %v685 = vadd.f32 %v683, %v684
    %v686 = vadd.f32 %v654, %v658
    %v687 = vadd.f32 %v686, %v662
    %v688 = vadd.f32 %v687, %v666
    %v689 = vrot.slane %v688, 4
    %v690 = vadd.f32 %v688, %v689
    %v691 = vrot.slane %v690, 2
    %v692 = vadd.f32 %v690, %v691
    %v693 = vrot.slane %v692, 1
    %v694 = vadd.f32 %v692, %v693
    %v695 = vadd.f32 %v655, %v659
    %v696 = vadd.f32 %v695, %v663
    %v697 = vadd.f32 %v696, %v667
    %v698 = vrot.slane %v697, 4
    %v699 = vadd.f32 %v697, %v698
    %v700 = vrot.slane %v699, 2
    %v701 = vadd.f32 %v699, %v700
    %v702 = vrot.slane %v701, 1
    %v703 = vadd.f32 %v701, %v702
    %v708 = vcombine.low %v676, %v685
    %v709 = vcombine.low %v694, %v703
    %v711 = vunpack.c.l.s4 1966171168
    %v712 = vunpack.c.0.s8 %v711
    %v713 = vlaneseq
    %v714 = vshrl.u32 %v713, 7
    %v715 = vsub.s32 %v712, %v714
    %v716 = vrot.slane %v708, %v715
    %v718 = vunpack.c.l.s4 1966171168
    %v719 = vunpack.c.0.s8 %v718
    %v720 = vlaneseq
    %v721 = vshrl.u32 %v720, 7
    %v722 = vsub.s32 %v719, %v721
    %v723 = vrot.slane %v709, %v722
    %v724 = vcombine.low %v716, %v723
    %v726 = vunpack.c.l.s4 1966171168
    %v727 = vunpack.c.0.s8 %v726
    %v728 = vlaneseq
    %v729 = vshrl.u32 %v728, 7
    %v730 = vsub.s32 %v727, %v729
    %v731 = vrot.slane %v724, %v730
    %s733 = scalar_lea.vmem [#allocation2], 5
    %734 = vst.msk [vmem:[%s733] ss:$8 sm:$0xf] %vm233, %v731
    %735 = vst.msk [vmem:[%s733] ss:$8 sm:$0x0] %vm233, %v731
    %736 = vset.pattern.permute.xlu0 6
    %737 = vperm.xlu0 %736, %v19
    %v738 = vpop.permute.xlu0 %737
    %740 = vset.pattern.permute.xlu0 6
    %741 = vperm.xlu0 %740, %v20
    %v742 = vpop.permute.xlu0 %741
    %744 = vset.pattern.permute.xlu0 6
    %745 = vperm.xlu0 %744, %v21
    %v746 = vpop.permute.xlu0 %745
    %748 = vset.pattern.permute.xlu0 6
    %749 = vperm.xlu0 %748, %v22
    %v750 = vpop.permute.xlu0 %749
    %v752 = vmul.f32 %v738, %v113
    %v753 = vmul.f32 %v738, %v114
    %v754 = vmul.f32 %v738, %v115
    %v755 = vmul.f32 %v738, %v116
    %v756 = vmul.f32 %v742, %v117
    %v757 = vmul.f32 %v742, %v118
    %v758 = vmul.f32 %v742, %v119
    %v759 = vmul.f32 %v742, %v120
    %v760 = vmul.f32 %v746, %v121
    %v761 = vmul.f32 %v746, %v122
    %v762 = vmul.f32 %v746, %v123
    %v763 = vmul.f32 %v746, %v124
    %v764 = vmul.f32 %v750, %v125
    %v765 = vmul.f32 %v750, %v126
    %v766 = vmul.f32 %v750, %v127
    %v767 = vmul.f32 %v750, %v128
    %v768 = vadd.f32 %v752, %v756
    %v769 = vadd.f32 %v768, %v760
    %v770 = vadd.f32 %v769, %v764
    %v771 = vrot.slane %v770, 4
    %v772 = vadd.f32 %v770, %v771
    %v773 = vrot.slane %v772, 2
    %v774 = vadd.f32 %v772, %v773
    %v775 = vrot.slane %v774, 1
    %v776 = vadd.f32 %v774, %v775
    %v777 = vadd.f32 %v753, %v757
    %v778 = vadd.f32 %v777, %v761
    %v779 = vadd.f32 %v778, %v765
    %v780 = vrot.slane %v779, 4
    %v781 = vadd.f32 %v779, %v780
    %v782 = vrot.slane %v781, 2
    %v783 = vadd.f32 %v781, %v782
    %v784 = vrot.slane %v783, 1
    %v785 = vadd.f32 %v783, %v784
    %v786 = vadd.f32 %v754, %v758
    %v787 = vadd.f32 %v786, %v762
    %v788 = vadd.f32 %v787, %v766
    %v789 = vrot.slane %v788, 4
    %v790 = vadd.f32 %v788, %v789
    %v791 = vrot.slane %v790, 2
    %v792 = vadd.f32 %v790, %v791
    %v793 = vrot.slane %v792, 1
    %v794 = vadd.f32 %v792, %v793
    %v795 = vadd.f32 %v755, %v759
    %v796 = vadd.f32 %v795, %v763
    %v797 = vadd.f32 %v796, %v767
    %v798 = vrot.slane %v797, 4
    %v799 = vadd.f32 %v797, %v798
    %v800 = vrot.slane %v799, 2
    %v801 = vadd.f32 %v799, %v800
    %v802 = vrot.slane %v801, 1
    %v803 = vadd.f32 %v801, %v802
    %v808 = vcombine.low %v776, %v785
    %v809 = vcombine.low %v794, %v803
    %v811 = vunpack.c.l.s4 1966171168
    %v812 = vunpack.c.0.s8 %v811
    %v813 = vlaneseq
    %v814 = vshrl.u32 %v813, 7
    %v815 = vsub.s32 %v812, %v814
    %v816 = vrot.slane %v808, %v815
    %v818 = vunpack.c.l.s4 1966171168
    %v819 = vunpack.c.0.s8 %v818
    %v820 = vlaneseq
    %v821 = vshrl.u32 %v820, 7
    %v822 = vsub.s32 %v819, %v821
    %v823 = vrot.slane %v809, %v822
    %v824 = vcombine.low %v816, %v823
    %v826 = vunpack.c.l.s4 1966171168
    %v827 = vunpack.c.0.s8 %v826
    %v828 = vlaneseq
    %v829 = vshrl.u32 %v828, 7
    %v830 = vsub.s32 %v827, %v829
    %v831 = vrot.slane %v824, %v830
    %s833 = scalar_lea.vmem [#allocation2], 6
    %834 = vst.msk [vmem:[%s833] ss:$8 sm:$0xf] %vm233, %v831
    %835 = vst.msk [vmem:[%s833] ss:$8 sm:$0x0] %vm233, %v831
    %836 = vset.pattern.permute.xlu0 7
    %837 = vperm.xlu0 %836, %v19
    %v838 = vpop.permute.xlu0 %837
    %840 = vset.pattern.permute.xlu0 7
    %841 = vperm.xlu0 %840, %v20
    %v842 = vpop.permute.xlu0 %841
    %844 = vset.pattern.permute.xlu0 7
    %845 = vperm.xlu0 %844, %v21
    %v846 = vpop.permute.xlu0 %845
    %848 = vset.pattern.permute.xlu0 7
    %849 = vperm.xlu0 %848, %v22
    %v850 = vpop.permute.xlu0 %849
    %v852 = vmul.f32 %v838, %v113
    %v853 = vmul.f32 %v838, %v114
    %v854 = vmul.f32 %v838, %v115
    %v855 = vmul.f32 %v838, %v116
    %v856 = vmul.f32 %v842, %v117
    %v857 = vmul.f32 %v842, %v118
    %v858 = vmul.f32 %v842, %v119
    %v859 = vmul.f32 %v842, %v120
    %v860 = vmul.f32 %v846, %v121
    %v861 = vmul.f32 %v846, %v122
    %v862 = vmul.f32 %v846, %v123
    %v863 = vmul.f32 %v846, %v124
    %v864 = vmul.f32 %v850, %v125
    %v865 = vmul.f32 %v850, %v126
    %v866 = vmul.f32 %v850, %v127
    %v867 = vmul.f32 %v850, %v128
    %v868 = vadd.f32 %v852, %v856
    %v869 = vadd.f32 %v868, %v860
    %v870 = vadd.f32 %v869, %v864
    %v871 = vrot.slane %v870, 4
    %v872 = vadd.f32 %v870, %v871
    %v873 = vrot.slane %v872, 2
    %v874 = vadd.f32 %v872, %v873
    %v875 = vrot.slane %v874, 1
    %v876 = vadd.f32 %v874, %v875
    %v877 = vadd.f32 %v853, %v857
    %v878 = vadd.f32 %v877, %v861
    %v879 = vadd.f32 %v878, %v865
    %v880 = vrot.slane %v879, 4
    %v881 = vadd.f32 %v879, %v880
    %v882 = vrot.slane %v881, 2
    %v883 = vadd.f32 %v881, %v882
    %v884 = vrot.slane %v883, 1
    %v885 = vadd.f32 %v883, %v884
    %v886 = vadd.f32 %v854, %v858
    %v887 = vadd.f32 %v886, %v862
    %v888 = vadd.f32 %v887, %v866
    %v889 = vrot.slane %v888, 4
    %v890 = vadd.f32 %v888, %v889
    %v891 = vrot.slane %v890, 2
    %v892 = vadd.f32 %v890, %v891
    %v893 = vrot.slane %v892, 1
    %v894 = vadd.f32 %v892, %v893
    %v895 = vadd.f32 %v855, %v859
    %v896 = vadd.f32 %v895, %v863
    %v897 = vadd.f32 %v896, %v867
    %v898 = vrot.slane %v897, 4
    %v899 = vadd.f32 %v897, %v898
    %v900 = vrot.slane %v899, 2
    %v901 = vadd.f32 %v899, %v900
    %v902 = vrot.slane %v901, 1
    %v903 = vadd.f32 %v901, %v902
    %v908 = vcombine.low %v876, %v885
    %v909 = vcombine.low %v894, %v903
    %v911 = vunpack.c.l.s4 1966171168
    %v912 = vunpack.c.0.s8 %v911
    %v913 = vlaneseq
    %v914 = vshrl.u32 %v913, 7
    %v915 = vsub.s32 %v912, %v914
    %v916 = vrot.slane %v908, %v915
    %v918 = vunpack.c.l.s4 1966171168
    %v919 = vunpack.c.0.s8 %v918
    %v920 = vlaneseq
    %v921 = vshrl.u32 %v920, 7
    %v922 = vsub.s32 %v919, %v921
    %v923 = vrot.slane %v909, %v922
    %v924 = vcombine.low %v916, %v923
    %v926 = vunpack.c.l.s4 1966171168
    %v927 = vunpack.c.0.s8 %v926
    %v928 = vlaneseq
    %v929 = vshrl.u32 %v928, 7
    %v930 = vsub.s32 %v927, %v929
    %v931 = vrot.slane %v924, %v930
    %s933 = scalar_lea.vmem [#allocation2], 7
    %934 = vst.msk [vmem:[%s933] ss:$8 sm:$0xf] %vm233, %v931
    %935 = vst.msk [vmem:[%s933] ss:$8 sm:$0x0] %vm233, %v931
    %936 = vset.pattern.permute.xlu0 8
    %937 = vperm.xlu0 %936, %v19
    %v938 = vpop.permute.xlu0 %937
    %940 = vset.pattern.permute.xlu0 8
    %941 = vperm.xlu0 %940, %v20
    %v942 = vpop.permute.xlu0 %941
    %944 = vset.pattern.permute.xlu0 8
    %945 = vperm.xlu0 %944, %v21
    %v946 = vpop.permute.xlu0 %945
    %948 = vset.pattern.permute.xlu0 8
    %949 = vperm.xlu0 %948, %v22
    %v950 = vpop.permute.xlu0 %949
    %v952 = vmul.f32 %v938, %v113
    %v953 = vmul.f32 %v938, %v114
    %v954 = vmul.f32 %v938, %v115
    %v955 = vmul.f32 %v938, %v116
    %v956 = vmul.f32 %v942, %v117
    %v957 = vmul.f32 %v942, %v118
    %v958 = vmul.f32 %v942, %v119
    %v959 = vmul.f32 %v942, %v120
    %v960 = vmul.f32 %v946, %v121
    %v961 = vmul.f32 %v946, %v122
    %v962 = vmul.f32 %v946, %v123
    %v963 = vmul.f32 %v946, %v124
    %v964 = vmul.f32 %v950, %v125
    %v965 = vmul.f32 %v950, %v126
    %v966 = vmul.f32 %v950, %v127
    %v967 = vmul.f32 %v950, %v128
    %v968 = vadd.f32 %v952, %v956
    %v969 = vadd.f32 %v968, %v960
    %v970 = vadd.f32 %v969, %v964
    %v971 = vrot.slane %v970, 4
    %v972 = vadd.f32 %v970, %v971
    %v973 = vrot.slane %v972, 2
    %v974 = vadd.f32 %v972, %v973
    %v975 = vrot.slane %v974, 1
    %v976 = vadd.f32 %v974, %v975
    %v977 = vadd.f32 %v953, %v957
    %v978 = vadd.f32 %v977, %v961
    %v979 = vadd.f32 %v978, %v965
    %v980 = vrot.slane %v979, 4
    %v981 = vadd.f32 %v979, %v980
    %v982 = vrot.slane %v981, 2
    %v983 = vadd.f32 %v981, %v982
    %v984 = vrot.slane %v983, 1
    %v985 = vadd.f32 %v983, %v984
    %v986 = vadd.f32 %v954, %v958
    %v987 = vadd.f32 %v986, %v962
    %v988 = vadd.f32 %v987, %v966
    %v989 = vrot.slane %v988, 4
    %v990 = vadd.f32 %v988, %v989
    %v991 = vrot.slane %v990, 2
    %v992 = vadd.f32 %v990, %v991
    %v993 = vrot.slane %v992, 1
    %v994 = vadd.f32 %v992, %v993
    %v995 = vadd.f32 %v955, %v959
    %v996 = vadd.f32 %v995, %v963
    %v997 = vadd.f32 %v996, %v967
    %v998 = vrot.slane %v997, 4
    %v999 = vadd.f32 %v997, %v998
    %v1000 = vrot.slane %v999, 2
    %v1001 = vadd.f32 %v999, %v1000
    %v1002 = vrot.slane %v1001, 1
    %v1003 = vadd.f32 %v1001, %v1002
    %v1008 = vcombine.low %v976, %v985
    %v1009 = vcombine.low %v994, %v1003
    %v1011 = vunpack.c.l.s4 1966171168
    %v1012 = vunpack.c.0.s8 %v1011
    %v1013 = vlaneseq
    %v1014 = vshrl.u32 %v1013, 7
    %v1015 = vsub.s32 %v1012, %v1014
    %v1016 = vrot.slane %v1008, %v1015
    %v1018 = vunpack.c.l.s4 1966171168
    %v1019 = vunpack.c.0.s8 %v1018
    %v1020 = vlaneseq
    %v1021 = vshrl.u32 %v1020, 7
    %v1022 = vsub.s32 %v1019, %v1021
    %v1023 = vrot.slane %v1009, %v1022
    %v1024 = vcombine.low %v1016, %v1023
    %v1026 = vunpack.c.l.s4 1966171168
    %v1027 = vunpack.c.0.s8 %v1026
    %v1028 = vlaneseq
    %v1029 = vshrl.u32 %v1028, 7
    %v1030 = vsub.s32 %v1027, %v1029
    %v1031 = vrot.slane %v1024, %v1030
    %s1033 = scalar_lea.vmem [#allocation2], 32
    %1034 = vst.msk [vmem:[%s1033] ss:$8 sm:$0xf] %vm233, %v1031
    %1035 = vst.msk [vmem:[%s1033] ss:$8 sm:$0x0] %vm233, %v1031
    %1036 = vset.pattern.permute.xlu0 9
    %1037 = vperm.xlu0 %1036, %v19
    %v1038 = vpop.permute.xlu0 %1037
    %1040 = vset.pattern.permute.xlu0 9
    %1041 = vperm.xlu0 %1040, %v20
    %v1042 = vpop.permute.xlu0 %1041
    %1044 = vset.pattern.permute.xlu0 9
    %1045 = vperm.xlu0 %1044, %v21
    %v1046 = vpop.permute.xlu0 %1045
    %1048 = vset.pattern.permute.xlu0 9
    %1049 = vperm.xlu0 %1048, %v22
    %v1050 = vpop.permute.xlu0 %1049
    %v1052 = vmul.f32 %v1038, %v113
    %v1053 = vmul.f32 %v1038, %v114
    %v1054 = vmul.f32 %v1038, %v115
    %v1055 = vmul.f32 %v1038, %v116
    %v1056 = vmul.f32 %v1042, %v117
    %v1057 = vmul.f32 %v1042, %v118
    %v1058 = vmul.f32 %v1042, %v119
    %v1059 = vmul.f32 %v1042, %v120
    %v1060 = vmul.f32 %v1046, %v121
    %v1061 = vmul.f32 %v1046, %v122
    %v1062 = vmul.f32 %v1046, %v123
    %v1063 = vmul.f32 %v1046, %v124
    %v1064 = vmul.f32 %v1050, %v125
    %v1065 = vmul.f32 %v1050, %v126
    %v1066 = vmul.f32 %v1050, %v127
    %v1067 = vmul.f32 %v1050, %v128
    %v1068 = vadd.f32 %v1052, %v1056
    %v1069 = vadd.f32 %v1068, %v1060
    %v1070 = vadd.f32 %v1069, %v1064
    %v1071 = vrot.slane %v1070, 4
    %v1072 = vadd.f32 %v1070, %v1071
    %v1073 = vrot.slane %v1072, 2
    %v1074 = vadd.f32 %v1072, %v1073
    %v1075 = vrot.slane %v1074, 1
    %v1076 = vadd.f32 %v1074, %v1075
    %v1077 = vadd.f32 %v1053, %v1057
    %v1078 = vadd.f32 %v1077, %v1061
    %v1079 = vadd.f32 %v1078, %v1065
    %v1080 = vrot.slane %v1079, 4
    %v1081 = vadd.f32 %v1079, %v1080
    %v1082 = vrot.slane %v1081, 2
    %v1083 = vadd.f32 %v1081, %v1082
    %v1084 = vrot.slane %v1083, 1
    %v1085 = vadd.f32 %v1083, %v1084
    %v1086 = vadd.f32 %v1054, %v1058
    %v1087 = vadd.f32 %v1086, %v1062
    %v1088 = vadd.f32 %v1087, %v1066
    %v1089 = vrot.slane %v1088, 4
    %v1090 = vadd.f32 %v1088, %v1089
    %v1091 = vrot.slane %v1090, 2
    %v1092 = vadd.f32 %v1090, %v1091
    %v1093 = vrot.slane %v1092, 1
    %v1094 = vadd.f32 %v1092, %v1093
    %v1095 = vadd.f32 %v1055, %v1059
    %v1096 = vadd.f32 %v1095, %v1063
    %v1097 = vadd.f32 %v1096, %v1067
    %v1098 = vrot.slane %v1097, 4
    %v1099 = vadd.f32 %v1097, %v1098
    %v1100 = vrot.slane %v1099, 2
    %v1101 = vadd.f32 %v1099, %v1100
    %v1102 = vrot.slane %v1101, 1
    %v1103 = vadd.f32 %v1101, %v1102
    %v1108 = vcombine.low %v1076, %v1085
    %v1109 = vcombine.low %v1094, %v1103
    %v1111 = vunpack.c.l.s4 1966171168
    %v1112 = vunpack.c.0.s8 %v1111
    %v1113 = vlaneseq
    %v1114 = vshrl.u32 %v1113, 7
    %v1115 = vsub.s32 %v1112, %v1114
    %v1116 = vrot.slane %v1108, %v1115
    %v1118 = vunpack.c.l.s4 1966171168
    %v1119 = vunpack.c.0.s8 %v1118
    %v1120 = vlaneseq
    %v1121 = vshrl.u32 %v1120, 7
    %v1122 = vsub.s32 %v1119, %v1121
    %v1123 = vrot.slane %v1109, %v1122
    %v1124 = vcombine.low %v1116, %v1123
    %v1126 = vunpack.c.l.s4 1966171168
    %v1127 = vunpack.c.0.s8 %v1126
    %v1128 = vlaneseq
    %v1129 = vshrl.u32 %v1128, 7
    %v1130 = vsub.s32 %v1127, %v1129
    %v1131 = vrot.slane %v1124, %v1130
    %s1133 = scalar_lea.vmem [#allocation2], 33
    %1134 = vst.msk [vmem:[%s1133] ss:$8 sm:$0xf] %vm233, %v1131
    %1135 = vst.msk [vmem:[%s1133] ss:$8 sm:$0x0] %vm233, %v1131
    // Predicated region
    $region14: #{tpu_custom_call.1} parent=1 // pred_check
      _
    $region15: #{tpu_custom_call.1} parent=1 // pred_check_branch
      %1137 = sbr.rel (0) target = $region17
    $region16: #{tpu_custom_call.1} parent=1 // pred_region
      %s1139 = ssub.s32 1024, 1024
      %1140 = vsyncadd [#allocation3], %s1139
      %s1141 = sshll.u32 [#allocation2], 4
      %s1142 = int_to_ptr.vmem [resolvable:$true] %s1141
      %1147 = dma.vmem_to_hbm [thread:$0]  %s1142, 1024, %s3, [#allocation3], 512, 512, 32
    $region17: #{tpu_custom_call.1} parent=1 // pred_fallthru
      _
    // Predicated region
    $region18: #{tpu_custom_call.1} parent=1 // pred_check
      _
    $region19: #{tpu_custom_call.1} parent=1 // pred_check_branch
      %1149 = sbr.rel (0) target = $region21
    $region20: #{tpu_custom_call.1} parent=1 // pred_region
      %1150 = dma.done [#allocation3], 1024
    $region21: #{tpu_custom_call.1} parent=1 // pred_fallthru
      _
    %1151 = vsyncpa [#allocation3], 1

</llo_original>
